<compile_context>
chip_gen: v7x
topology: tpu7x:2x2x1
jax: 0.10.0
libtpu: 0.0.40
codegen_flags: <defaults>
</compile_context>

<pallas_src>
import functools

import jax
import jax.numpy as jnp
import numpy as np
from jax import lax
from jax.experimental import pallas as pl
from jax.experimental.pallas import tpu as pltpu

HALO = 128  # lane-aligned causal left-context carried across time tiles (>= K-1)


def _subblock_kernel(x_ref, w_sg_ref, b_sg_ref, w_out_ref, b_out_ref,
                     o_ref, xb_ref, *, K, C_gate, TL):
    """One (batch, time-tile): fused sig|gate conv -> gating -> 1x1 conv -> +x."""
    t = pl.program_id(1)
    C_res = x_ref.shape[1]

    # New batch element: causal left context is zeros (== ConstantPad1d value).
    @pl.when(t == 0)
    def _():
        xb_ref[:, 0:HALO] = jnp.zeros((C_res, HALO), jnp.float32)

    xv = x_ref[0]                                  # (C_res, TL), lane-dense
    xb_ref[:, HALO:HALO + TL] = xv

    # Causal convolution for signal|gate as a sum of K tap matmuls.
    # tap k corresponds to x[:, t + k - (K-1)]  ->  xb column HALO-(K-1)+k + j.
    pre = jnp.dot(w_sg_ref[0], xb_ref[:, HALO - (K - 1): HALO - (K - 1) + TL],
                  preferred_element_type=jnp.float32)
    for k in range(1, K):
        lo = HALO - (K - 1) + k
        pre = pre + jnp.dot(w_sg_ref[k], xb_ref[:, lo: lo + TL],
                            preferred_element_type=jnp.float32)
    pre = pre + b_sg_ref[...]                      # (2*C_gate, TL)

    gated = jnp.maximum(pre[:C_gate], 0.0) * jax.nn.sigmoid(pre[C_gate:])

    out = (jnp.dot(w_out_ref[...], gated, preferred_element_type=jnp.float32)
           + b_out_ref[...] + xv)                  # 1x1 conv + bias + residual
    o_ref[0] = out

    # Carry the last HALO time columns into the halo slot for the next tile.
    xb_ref[:, 0:HALO] = xb_ref[:, TL:TL + HALO]


def subblock_forward(x, params, *, kernels, time_tile=None):
    """x: (B, C_res, L) float32 -> (B, C_res, L) float32."""
    w_sig, b_sig, w_gat, b_gat, w_out, b_out = params
    B, C_res, L = x.shape
    C_gate = w_sig.shape[0]
    K = kernels
    assert K - 1 <= HALO, "causal context must fit in the HALO carry"

    # ---- time tiling: lane-aligned tiles, sized so they pipeline nicely -----
    if time_tile is None:
        L128 = ((L + 127) // 128) * 128
        TL = min(L128, 1024)
    else:
        assert time_tile % 128 == 0 and time_tile >= 128
        TL = time_tile
    n_t = (L + TL - 1) // TL
    L_pad = n_t * TL

    x_p = jnp.pad(x.astype(jnp.float32), ((0, 0), (0, 0), (0, L_pad - L)))

    # ---- weights -> per-tap matmul form --------------------------------------
    # Conv1d weight (C_out, C_in, K); stack sig|gate along C_out, taps leading.
    w_cat = jnp.concatenate([w_sig, w_gat], axis=0)             # (2G, C_res, K)
    w_sg = jnp.transpose(w_cat, (2, 0, 1)).astype(jnp.float32)  # (K, 2G, C_res)
    b_sg = jnp.concatenate([b_sig, b_gat]).reshape(2 * C_gate, 1).astype(jnp.float32)
    wo = w_out[:, :, 0].astype(jnp.float32)                     # (C_res, C_gate)
    bo = b_out.reshape(C_res, 1).astype(jnp.float32)

    kernel = functools.partial(_subblock_kernel, K=K, C_gate=C_gate, TL=TL)
    const = lambda b, t: (0,) * 2
    const3 = lambda b, t: (0,) * 3

    out = pl.pallas_call(
        kernel,
        out_shape=jax.ShapeDtypeStruct((B, C_res, L_pad), jnp.float32),
        grid=(B, n_t),
        in_specs=[
            pl.BlockSpec((1, C_res, TL), lambda b, t: (b, 0, t)),
            pl.BlockSpec(w_sg.shape, const3),   # weights stay VMEM-resident
            pl.BlockSpec(b_sg.shape, const),
            pl.BlockSpec(wo.shape, const),
            pl.BlockSpec(bo.shape, const),
        ],
        out_specs=pl.BlockSpec((1, C_res, TL), lambda b, t: (b, 0, t)),
        scratch_shapes=[pltpu.VMEM((C_res, HALO + TL), jnp.float32)],
        compiler_params=pltpu.CompilerParams(
            dimension_semantics=("parallel", "arbitrary"),
            vmem_limit_bytes=32 * 1024 * 1024,
        ),
    )(x_p, w_sg, b_sg, wo, bo)

    return out[:, :, :L]


def subblock_reference(x, params, *, kernels):
    """Pure-JAX reference using lax.conv (independent of the kernel path)."""
    w_sig, b_sig, w_gat, b_gat, w_out, b_out = params
    K = kernels
    dn = ("NCH", "OIH", "NCH")

    def conv(inp, w, b, pad):
        y = lax.conv_general_dilated(inp, w, window_strides=(1,),
                                     padding=[pad], dimension_numbers=dn)
        return y + b[None, :, None]

    y_sig = jax.nn.relu(conv(x, w_sig, b_sig, (K - 1, 0)))
    y_gat = jax.nn.sigmoid(conv(x, w_gat, b_gat, (K - 1, 0)))
    y = conv(y_sig * y_gat, w_out, b_out, (0, 0))
    return y + x


if __name__ == "__main__":
    # module hyper-params
    kernels = 3
    gate_channels = 8
    residual_channels = 4
    batch, seq = 2, 16

    key = jax.random.PRNGKey(0)
    k_x, k_ws, k_bs, k_wg, k_bg, k_wo, k_bo, k_x2 = jax.random.split(key, 8)

    # deterministic synthetic parameters (Conv1d weight layout: (C_out, C_in, K))
    params = (
        0.3 * jax.random.normal(k_ws, (gate_channels, residual_channels, kernels), jnp.float32),
        0.1 * jax.random.normal(k_bs, (gate_channels,), jnp.float32),
        0.3 * jax.random.normal(k_wg, (gate_channels, residual_channels, kernels), jnp.float32),
        0.1 * jax.random.normal(k_bg, (gate_channels,), jnp.float32),
        0.3 * jax.random.normal(k_wo, (residual_channels, gate_channels, 1), jnp.float32),
        0.1 * jax.random.normal(k_bo, (residual_channels,), jnp.float32),
    )

    # --- primary small-shape check (module-implied sizes) --------------------
    x = jax.random.normal(k_x, (batch, residual_channels, seq), jnp.float32)
    fwd = jax.jit(functools.partial(subblock_forward, kernels=kernels))
    out = jax.block_until_ready(fwd(x, params))
    ref = jax.block_until_ready(subblock_reference(x, params, kernels=kernels))
    np.testing.assert_allclose(np.asarray(out), np.asarray(ref), rtol=1e-5, atol=1e-5)

    # --- multi-tile check: exercises the cross-tile causal carry -------------
    x2 = jax.random.normal(k_x2, (batch, residual_channels, 300), jnp.float32)
    fwd2 = jax.jit(functools.partial(subblock_forward, kernels=kernels, time_tile=128))
    out2 = jax.block_until_ready(fwd2(x2, params))
    ref2 = jax.block_until_ready(subblock_reference(x2, params, kernels=kernels))
    np.testing.assert_allclose(np.asarray(out2), np.asarray(ref2), rtol=1e-5, atol=1e-5)

    print("KERNEL_OK")
</pallas_src>

<mosaic_0001>
module attributes {stable_mosaic.version = 11 : i64} {
  func.func @_subblock_kernel(%arg0: i32, %arg1: i32, %arg2: memref<1x4x128xf32, #tpu.memory_space<vmem>>, %arg3: memref<3x16x4xf32, #tpu.memory_space<vmem>>, %arg4: memref<16x1xf32, #tpu.memory_space<vmem>>, %arg5: memref<4x8xf32, #tpu.memory_space<vmem>>, %arg6: memref<4x1xf32, #tpu.memory_space<vmem>>, %arg7: memref<1x4x128xf32, #tpu.memory_space<vmem>>, %arg8: memref<4x256xf32, #tpu.memory_space<vmem>>) attributes {dimension_semantics = [#tpu.dimension_semantics<parallel>, #tpu.dimension_semantics<arbitrary>], iteration_bounds = array<i64: 2, 1>, scalar_prefetch = 0 : i64, scratch_operands = 1 : i64, tpu.core_type = #tpu.core_type<tc>, window_params = [{transform_indices = @transform_0, window_bounds = array<i64: 1, 4, 128>}, {pipeline_mode = #tpu.pipeline_mode<synchronous>, transform_indices = @transform_1, window_bounds = array<i64: 3, 16, 4>}, {pipeline_mode = #tpu.pipeline_mode<synchronous>, transform_indices = @transform_2, window_bounds = array<i64: 16, 1>}, {pipeline_mode = #tpu.pipeline_mode<synchronous>, transform_indices = @transform_3, window_bounds = array<i64: 4, 8>}, {pipeline_mode = #tpu.pipeline_mode<synchronous>, transform_indices = @transform_4, window_bounds = array<i64: 4, 1>}, {transform_indices = @transform_5, window_bounds = array<i64: 1, 4, 128>}]} {
    %c0_i32 = arith.constant 0 : i32
    %0 = arith.cmpi eq, %arg1, %c0_i32 : i32
    %1 = arith.extui %0 : i1 to i32
    %c0_i32_0 = arith.constant 0 : i32
    %2 = arith.cmpi ne, %1, %c0_i32_0 : i32
    scf.if %2 {
      %cst_33 = arith.constant 0.000000e+00 : f32
      %44 = vector.broadcast %cst_33 : f32 to vector<4x128xf32>
      %c0_34 = arith.constant 0 : index
      %c0_35 = arith.constant 0 : index
      %45 = vector.load %arg8[%c0_34, %c0_35] : memref<4x256xf32, #tpu.memory_space<vmem>>, vector<4x128xf32>
      tpu.vector_store %arg8[%c0_34, %c0_35], %44 {strides = array<i32>} : memref<4x256xf32, #tpu.memory_space<vmem>>, vector<4x128xf32>,
    } else {
    }
    %c0 = arith.constant 0 : index
    %c0_1 = arith.constant 0 : index
    %c0_2 = arith.constant 0 : index
    %3 = vector.load %arg2[%c0, %c0_1, %c0_2] : memref<1x4x128xf32, #tpu.memory_space<vmem>>, vector<1x4x128xf32>
    %4 = vector.shape_cast %3 : vector<1x4x128xf32> to vector<4x128xf32>
    %c0_3 = arith.constant 0 : index
    %c128 = arith.constant 128 : index
    %5 = vector.load %arg8[%c0_3, %c128] : memref<4x256xf32, #tpu.memory_space<vmem>>, vector<4x128xf32>
    tpu.vector_store %arg8[%c0_3, %c128], %4 {strides = array<i32>} : memref<4x256xf32, #tpu.memory_space<vmem>>, vector<4x128xf32>,
    %c0_4 = arith.constant 0 : index
    %c0_5 = arith.constant 0 : index
    %c0_6 = arith.constant 0 : index
    %6 = vector.load %arg3[%c0_4, %c0_5, %c0_6] : memref<3x16x4xf32, #tpu.memory_space<vmem>>, vector<1x16x4xf32>
    %7 = vector.shape_cast %6 : vector<1x16x4xf32> to vector<16x4xf32>
    %c0_7 = arith.constant 0 : index
    %c126 = arith.constant 126 : index
    %8 = vector.load %arg8[%c0_7, %c126] : memref<4x256xf32, #tpu.memory_space<vmem>>, vector<4x128xf32>
    %cst = arith.constant dense<0.000000e+00> : vector<16x128xf32>
    %9 = tpu.matmul %7, %8, %cst {dimension_numbers = #tpu.dot_dimension_numbers<[1], [0], [0], [1], [0, 0, 1, 1], [], []>} : vector<16x4xf32>, vector<4x128xf32>, vector<16x128xf32> -> vector<16x128xf32>
    %c1 = arith.constant 1 : index
    %c0_8 = arith.constant 0 : index
    %c0_9 = arith.constant 0 : index
    %10 = vector.load %arg3[%c1, %c0_8, %c0_9] : memref<3x16x4xf32, #tpu.memory_space<vmem>>, vector<1x16x4xf32>
    %11 = vector.shape_cast %10 : vector<1x16x4xf32> to vector<16x4xf32>
    %c0_10 = arith.constant 0 : index
    %c127 = arith.constant 127 : index
    %12 = vector.load %arg8[%c0_10, %c127] : memref<4x256xf32, #tpu.memory_space<vmem>>, vector<4x128xf32>
    %cst_11 = arith.constant dense<0.000000e+00> : vector<16x128xf32>
    %13 = tpu.matmul %11, %12, %cst_11 {dimension_numbers = #tpu.dot_dimension_numbers<[1], [0], [0], [1], [0, 0, 1, 1], [], []>} : vector<16x4xf32>, vector<4x128xf32>, vector<16x128xf32> -> vector<16x128xf32>
    %14 = arith.addf %9, %13 : vector<16x128xf32>
    %c2 = arith.constant 2 : index
    %c0_12 = arith.constant 0 : index
    %c0_13 = arith.constant 0 : index
    %15 = vector.load %arg3[%c2, %c0_12, %c0_13] : memref<3x16x4xf32, #tpu.memory_space<vmem>>, vector<1x16x4xf32>
    %16 = vector.shape_cast %15 : vector<1x16x4xf32> to vector<16x4xf32>
    %c0_14 = arith.constant 0 : index
    %c128_15 = arith.constant 128 : index
    %17 = vector.load %arg8[%c0_14, %c128_15] : memref<4x256xf32, #tpu.memory_space<vmem>>, vector<4x128xf32>
    %cst_16 = arith.constant dense<0.000000e+00> : vector<16x128xf32>
    %18 = tpu.matmul %16, %17, %cst_16 {dimension_numbers = #tpu.dot_dimension_numbers<[1], [0], [0], [1], [0, 0, 1, 1], [], []>} : vector<16x4xf32>, vector<4x128xf32>, vector<16x128xf32> -> vector<16x128xf32>
    %19 = arith.addf %14, %18 : vector<16x128xf32>
    %c0_17 = arith.constant 0 : index
    %c0_18 = arith.constant 0 : index
    %20 = vector.load %arg4[%c0_17, %c0_18] : memref<16x1xf32, #tpu.memory_space<vmem>>, vector<16x1xf32>
    %21 = vector.broadcast %20 : vector<16x1xf32> to vector<16x128xf32>
    %22 = arith.addf %19, %21 : vector<16x128xf32>
    %23 = vector.extract_strided_slice %22 {offsets = [0, 0], sizes = [8, 128], strides = [1, 1]} : vector<16x128xf32> to vector<8x128xf32>
    %cst_19 = arith.constant 0.000000e+00 : f32
    %24 = vector.broadcast %cst_19 : f32 to vector<8x128xf32>
    %25 = arith.maximumf %23, %24 : vector<8x128xf32>
    %26 = vector.extract_strided_slice %22 {offsets = [8, 0], sizes = [8, 128], strides = [1, 1]} : vector<16x128xf32> to vector<8x128xf32>
    %27 = arith.negf %26 : vector<8x128xf32>
    %28 = math.exp %27 : vector<8x128xf32>
    %cst_20 = arith.constant 1.000000e+00 : f32
    %29 = vector.broadcast %cst_20 : f32 to vector<8x128xf32>
    %30 = arith.addf %29, %28 : vector<8x128xf32>
    %31 = arith.divf %29, %30 : vector<8x128xf32>
    %32 = arith.mulf %25, %31 : vector<8x128xf32>
    %c0_21 = arith.constant 0 : index
    %c0_22 = arith.constant 0 : index
    %33 = vector.load %arg5[%c0_21, %c0_22] : memref<4x8xf32, #tpu.memory_space<vmem>>, vector<4x8xf32>
    %cst_23 = arith.constant dense<0.000000e+00> : vector<4x128xf32>
    %34 = tpu.matmul %33, %32, %cst_23 {dimension_numbers = #tpu.dot_dimension_numbers<[1], [0], [0], [1], [0, 0, 1, 1], [], []>} : vector<4x8xf32>, vector<8x128xf32>, vector<4x128xf32> -> vector<4x128xf32>
    %c0_24 = arith.constant 0 : index
    %c0_25 = arith.constant 0 : index
    %35 = vector.load %arg6[%c0_24, %c0_25] : memref<4x1xf32, #tpu.memory_space<vmem>>, vector<4x1xf32>
    %36 = vector.broadcast %35 : vector<4x1xf32> to vector<4x128xf32>
    %37 = arith.addf %34, %36 : vector<4x128xf32>
    %38 = arith.addf %37, %4 : vector<4x128xf32>
    %c0_26 = arith.constant 0 : index
    %c0_27 = arith.constant 0 : index
    %c0_28 = arith.constant 0 : index
    %39 = vector.load %arg7[%c0_26, %c0_27, %c0_28] : memref<1x4x128xf32, #tpu.memory_space<vmem>>, vector<1x4x128xf32>
    %40 = vector.shape_cast %39 : vector<1x4x128xf32> to vector<4x128xf32>
    %41 = vector.shape_cast %38 : vector<4x128xf32> to vector<1x4x128xf32>
    tpu.vector_store %arg7[%c0_26, %c0_27, %c0_28], %41 {strides = array<i32>} : memref<1x4x128xf32, #tpu.memory_space<vmem>>, vector<1x4x128xf32>,
    %c0_29 = arith.constant 0 : index
    %c128_30 = arith.constant 128 : index
    %42 = vector.load %arg8[%c0_29, %c128_30] : memref<4x256xf32, #tpu.memory_space<vmem>>, vector<4x128xf32>
    %c0_31 = arith.constant 0 : index
    %c0_32 = arith.constant 0 : index
    %43 = vector.load %arg8[%c0_31, %c0_32] : memref<4x256xf32, #tpu.memory_space<vmem>>, vector<4x128xf32>
    tpu.vector_store %arg8[%c0_31, %c0_32], %42 {strides = array<i32>} : memref<4x256xf32, #tpu.memory_space<vmem>>, vector<4x128xf32>,
    return
  }
  func.func @transform_0(%arg0: i32, %arg1: i32) -> (i32, i32, i32) {
    %c0_i32 = arith.constant 0 : i32
    %c0_i32_0 = arith.constant 0 : i32
    return %arg0, %c0_i32, %arg1 : i32, i32, i32
  }
  func.func @transform_1(%arg0: i32, %arg1: i32) -> (i32, i32, i32) {
    %c0_i32 = arith.constant 0 : i32
    %c0_i32_0 = arith.constant 0 : i32
    %c0_i32_1 = arith.constant 0 : i32
    %c0_i32_2 = arith.constant 0 : i32
    return %c0_i32, %c0_i32_0, %c0_i32_1 : i32, i32, i32
  }
  func.func @transform_2(%arg0: i32, %arg1: i32) -> (i32, i32) {
    %c0_i32 = arith.constant 0 : i32
    %c0_i32_0 = arith.constant 0 : i32
    %c0_i32_1 = arith.constant 0 : i32
    return %c0_i32, %c0_i32_0 : i32, i32
  }
  func.func @transform_3(%arg0: i32, %arg1: i32) -> (i32, i32) {
    %c0_i32 = arith.constant 0 : i32
    %c0_i32_0 = arith.constant 0 : i32
    %c0_i32_1 = arith.constant 0 : i32
    return %c0_i32, %c0_i32_0 : i32, i32
  }
  func.func @transform_4(%arg0: i32, %arg1: i32) -> (i32, i32) {
    %c0_i32 = arith.constant 0 : i32
    %c0_i32_0 = arith.constant 0 : i32
    %c0_i32_1 = arith.constant 0 : i32
    return %c0_i32, %c0_i32_0 : i32, i32
  }
  func.func @transform_5(%arg0: i32, %arg1: i32) -> (i32, i32, i32) {
    %c0_i32 = arith.constant 0 : i32
    %c0_i32_0 = arith.constant 0 : i32
    return %arg0, %c0_i32, %arg1 : i32, i32, i32
  }
}

</mosaic_0001>

<llo_original>
// kernel: subblock_forward.1
$region0: #{subblock_forward.1}
  #allocation0 [shape = 'u32[]', space=smem, size = 0x4, offset = 0x4, fixed_abs, tag = 'smem constant byte address 0x4 - core index']
  #allocation1 [shape = 'u32[144,128]{1,0:T(1,128)}', space=vmem, size = 0x12000, scoped, tag = 'internal scratch']
  #allocation2 [shape = 'f32[4,256]{1,0:T(4,128)}', space=vmem, size = 0x1000, scoped, tag = 'scratch operand']
  %s0 = inlined_call_operand.vmem [shape: f32[2,4,128], index: 0, kind: input, shape index: {}]
  %s1 = inlined_call_operand.vmem [shape: f32[3,16,4], index: 1, kind: input, shape index: {}]
  %s2 = inlined_call_operand.vmem [shape: f32[16,1], index: 2, kind: input, shape index: {}]
  %s3 = inlined_call_operand.vmem [shape: f32[4,8], index: 3, kind: input, shape index: {}]
  %s4 = inlined_call_operand.vmem [shape: f32[4,1], index: 4, kind: input, shape index: {}]
  %s5 = inlined_call_operand.hbm [shape: f32[2,4,128], index: 5, kind: output, shape index: {}]
  %s6 = sld [smem:[#allocation0]]
  $region57: #{subblock_forward.1} parent=0
    _
  %s8 = ssub.s32 1, %s6
  %s9 = scalar_select 0, %s8, %s6
  $region1: #{subblock_forward.1} parent=0
    #allocation3 [shape = 'u8[4096]{0}', space=vmem, size = 0x1000, scoped, tag = 'output window, operand 0']
    #allocation4 [shape = 's32[2]{0}', space=sflag, size = 0x8, scoped, tag = 'scoped memory for subblock_forward.1']
    %10 = vsyncpa [#allocation4], 0
    %s11 = scalar_lea.sflag [#allocation4], 1
    %12 = vsyncpa %s11, 0
    loop: start=0, step=1, limit=4
    $region2: #{subblock_forward.1} parent=1 // loop_pre_header
      _
    $region3: #{subblock_forward.1} parent=1 // loop_header
      %s14 = sphi 0, %s18
      %p15 = scmp.ge.s32.totalorder %s14, 4
      %s21 = sphi 0, %s33
      %s22 = sphi 0, %s29
      %s23 = sphi 0, %s21
      %s24 = sphi 0, %s22
      %s25 = sphi 0, %s23
      %s26 = sphi 0, %s24
      %s38 = sphi 0, %s40
      %s41 = sphi 0, %s38
      %s42 = sphi 0, %s41
      %s58 = sphi 0, %s42
      %s62 = sphi 0, %s62
      %s64 = sphi 0, %s62
      %s65 = sphi 0, %s64
      %s79 = sphi 0, %s65
      %s83 = sphi 0, %s83
      %s85 = sphi 0, %s83
      %s86 = sphi 0, %s85
      %s100 = sphi 0, %s86
      %s104 = sphi 0, %s104
      %s106 = sphi 0, %s104
      %s107 = sphi 0, %s106
      %s121 = sphi 0, %s107
      %s125 = sphi 0, %s125
      %s127 = sphi 0, %s125
      %s128 = sphi 0, %s127
      %s142 = sphi 0, %s128
      %s150 = sphi 0, %s152
      %s153 = sphi 0, %s150
      %s154 = sphi 0, %s153
      %s170 = sphi 0, %s154
    $region4: #{subblock_forward.1} parent=1 // loop_header_branch
      %17 = sbr.rel (%p15) target = $region8
    $region5: #{subblock_forward.1} parent=1 // loop_body
      %s19 = ssub.s32 %s14, 1
      %s20 = ssub.s32 %s14, 2
      %s27 = sadd.s32 1, %s22
      %p28 = scmp.ge.s32.totalorder %s27, 1
      %s29 = scalar_select %p28, 0, %s27
      %s30 = sadd.s32 1, %s21
      %s31 = scalar_select %p28, %s30, %s21
      %p32 = scmp.ge.s32.totalorder %s31, 2
      %s33 = scalar_select %p32, 0, %s31
      %s34 = ssub.s32 %s21, %s33
      %s35 = ssub.s32 %s22, %s29
      %s36 = sor.u32 %s34, %s35
      %p37 = scmp.eq.s32.totalorder %s36, 0
      %s39 = sadd.s32 %s38, 1
      %s40 = scalar_select %p37, %s38, %s39
      %p43 = pneg %p37
      %p44 = scmp.eq.s32.totalorder %s14, 1
      %p45 = por %p43, %p44
      %p46 = scmp.ne.s32.totalorder %s38, %s41
      %p47 = scmp.eq.s32.totalorder %s14, 0
      %p48 = por %p46, %p47
      %p49 = scmp.ne.s32.totalorder %s38, %s41
      %p50 = scmp.eq.s32.totalorder %s19, 1
      %p51 = por %p49, %p50
      %p52 = scmp.ne.s32.totalorder %s41, %s42
      %p53 = scmp.eq.s32.totalorder %s19, 0
      %p54 = por %p52, %p53
      %p55 = scmp.ne.s32.totalorder %s41, %s42
      %p56 = scmp.eq.s32.totalorder %s20, 1
      %p57 = por %p55, %p56
      %p59 = scmp.ne.s32.totalorder %s42, %s58
      %p60 = scmp.eq.s32.totalorder %s20, 0
      %p61 = por %p59, %p60
      %s63 = sadd.s32 %s62, 1
      %p66 = scmp.eq.s32.totalorder %s14, 1
      %p67 = scmp.ne.s32.totalorder %s62, %s64
      %p68 = scmp.eq.s32.totalorder %s14, 0
      %p69 = por %p67, %p68
      %p70 = scmp.ne.s32.totalorder %s62, %s64
      %p71 = scmp.eq.s32.totalorder %s19, 1
      %p72 = por %p70, %p71
      %p73 = scmp.ne.s32.totalorder %s64, %s65
      %p74 = scmp.eq.s32.totalorder %s19, 0
      %p75 = por %p73, %p74
      %p76 = scmp.ne.s32.totalorder %s64, %s65
      %p77 = scmp.eq.s32.totalorder %s20, 1
      %p78 = por %p76, %p77
      %p80 = scmp.ne.s32.totalorder %s65, %s79
      %p81 = scmp.eq.s32.totalorder %s20, 0
      %p82 = por %p80, %p81
      %s84 = sadd.s32 %s83, 1
      %p87 = scmp.eq.s32.totalorder %s14, 1
      %p88 = scmp.ne.s32.totalorder %s83, %s85
      %p89 = scmp.eq.s32.totalorder %s14, 0
      %p90 = por %p88, %p89
      %p91 = scmp.ne.s32.totalorder %s83, %s85
      %p92 = scmp.eq.s32.totalorder %s19, 1
      %p93 = por %p91, %p92
      %p94 = scmp.ne.s32.totalorder %s85, %s86
      %p95 = scmp.eq.s32.totalorder %s19, 0
      %p96 = por %p94, %p95
      %p97 = scmp.ne.s32.totalorder %s85, %s86
      %p98 = scmp.eq.s32.totalorder %s20, 1
      %p99 = por %p97, %p98
      %p101 = scmp.ne.s32.totalorder %s86, %s100
      %p102 = scmp.eq.s32.totalorder %s20, 0
      %p103 = por %p101, %p102
      %s105 = sadd.s32 %s104, 1
      %p108 = scmp.eq.s32.totalorder %s14, 1
      %p109 = scmp.ne.s32.totalorder %s104, %s106
      %p110 = scmp.eq.s32.totalorder %s14, 0
      %p111 = por %p109, %p110
      %p112 = scmp.ne.s32.totalorder %s104, %s106
      %p113 = scmp.eq.s32.totalorder %s19, 1
      %p114 = por %p112, %p113
      %p115 = scmp.ne.s32.totalorder %s106, %s107
      %p116 = scmp.eq.s32.totalorder %s19, 0
      %p117 = por %p115, %p116
      %p118 = scmp.ne.s32.totalorder %s106, %s107
      %p119 = scmp.eq.s32.totalorder %s20, 1
      %p120 = por %p118, %p119
      %p122 = scmp.ne.s32.totalorder %s107, %s121
      %p123 = scmp.eq.s32.totalorder %s20, 0
      %p124 = por %p122, %p123
      %s126 = sadd.s32 %s125, 1
      %p129 = scmp.eq.s32.totalorder %s14, 1
      %p130 = scmp.ne.s32.totalorder %s125, %s127
      %p131 = scmp.eq.s32.totalorder %s14, 0
      %p132 = por %p130, %p131
      %p133 = scmp.ne.s32.totalorder %s125, %s127
      %p134 = scmp.eq.s32.totalorder %s19, 1
      %p135 = por %p133, %p134
      %p136 = scmp.ne.s32.totalorder %s127, %s128
      %p137 = scmp.eq.s32.totalorder %s19, 0
      %p138 = por %p136, %p137
      %p139 = scmp.ne.s32.totalorder %s127, %s128
      %p140 = scmp.eq.s32.totalorder %s20, 1
      %p141 = por %p139, %p140
      %p143 = scmp.ne.s32.totalorder %s128, %s142
      %p144 = scmp.eq.s32.totalorder %s20, 0
      %p145 = por %p143, %p144
      %s146 = ssub.s32 %s21, %s33
      %s147 = ssub.s32 %s22, %s29
      %s148 = sor.u32 %s146, %s147
      %p149 = scmp.eq.s32.totalorder %s148, 0
      %s151 = sadd.s32 %s150, 1
      %s152 = scalar_select %p149, %s150, %s151
      %p155 = pneg %p149
      %p156 = scmp.eq.s32.totalorder %s14, 1
      %p157 = por %p155, %p156
      %p158 = scmp.ne.s32.totalorder %s150, %s153
      %p159 = scmp.eq.s32.totalorder %s14, 0
      %p160 = por %p158, %p159
      %p161 = scmp.ne.s32.totalorder %s150, %s153
      %p162 = scmp.eq.s32.totalorder %s19, 1
      %p163 = por %p161, %p162
      %p164 = scmp.ne.s32.totalorder %s153, %s154
      %p165 = scmp.eq.s32.totalorder %s19, 0
      %p166 = por %p164, %p165
      %p167 = scmp.ne.s32.totalorder %s153, %s154
      %p168 = scmp.eq.s32.totalorder %s20, 1
      %p169 = por %p167, %p168
      %p171 = scmp.ne.s32.totalorder %s154, %s170
      %p172 = scmp.eq.s32.totalorder %s20, 0
      %p173 = por %p171, %p172
      %p174 = scmp.le.s32.totalorder 1, %s14
      %p175 = scmp.lt.s32.totalorder %s14, 3
      %p176 = pnand %p174, %p175
      %p177 = pneg %p176
      // Predicated region
      $region9: #{subblock_forward.1} parent=5 // pred_check
        _
      $region10: #{subblock_forward.1} parent=5 // pred_check_branch
        %179 = sbr.rel (%p176) target = $region12
      $region11: #{subblock_forward.1} parent=5 // pred_region
        %s180 = ssub.s32 %s14, 1
        // Predicated region
        $region13: #{subblock_forward.1} parent=11 // pred_check
          %p181 = pneg %p75
        $region14: #{subblock_forward.1} parent=11 // pred_check_branch
          %183 = sbr.rel (%p181) target = $region16
        $region15: #{subblock_forward.1} parent=11 // pred_region
          _
        $region16: #{subblock_forward.1} parent=11 // pred_fallthru
          _
        // Predicated region
        $region17: #{subblock_forward.1} parent=11 // pred_check
          %p184 = pneg %p96
        $region18: #{subblock_forward.1} parent=11 // pred_check_branch
          %186 = sbr.rel (%p184) target = $region20
        $region19: #{subblock_forward.1} parent=11 // pred_region
          _
        $region20: #{subblock_forward.1} parent=11 // pred_fallthru
          _
        // Predicated region
        $region21: #{subblock_forward.1} parent=11 // pred_check
          %p187 = pneg %p117
        $region22: #{subblock_forward.1} parent=11 // pred_check_branch
          %189 = sbr.rel (%p187) target = $region24
        $region23: #{subblock_forward.1} parent=11 // pred_region
          _
        $region24: #{subblock_forward.1} parent=11 // pred_fallthru
          _
        // Predicated region
        $region25: #{subblock_forward.1} parent=11 // pred_check
          %p190 = pneg %p138
        $region26: #{subblock_forward.1} parent=11 // pred_check_branch
          %192 = sbr.rel (%p190) target = $region28
        $region27: #{subblock_forward.1} parent=11 // pred_region
          _
        $region28: #{subblock_forward.1} parent=11 // pred_fallthru
          _
      $region12: #{subblock_forward.1} parent=5 // pred_fallthru
        _
      %p193 = scmp.lt.s32.totalorder %s14, 2
      // Predicated region
      $region29: #{subblock_forward.1} parent=5 // pred_check
        %p194 = pneg %p193
      $region30: #{subblock_forward.1} parent=5 // pred_check_branch
        %196 = sbr.rel (%p194) target = $region32
      $region31: #{subblock_forward.1} parent=5 // pred_region
        // Predicated region
        $region33: #{subblock_forward.1} parent=31 // pred_check
          %p197 = pneg %p48
        $region34: #{subblock_forward.1} parent=31 // pred_check_branch
          %199 = sbr.rel (%p197) target = $region36
        $region35: #{subblock_forward.1} parent=31 // pred_region
          %p200 = scmp.lt.s32.totalorder %s21, 1
          %s201 = scalar_select %p200, %s21, 1
          %p202 = scmp.lt.s32.totalorder %s22, 0
          %s203 = scalar_select %p202, %s22, 0
          %s204 = sadd.s32 %s203, %s201
          %s205 = smul.addr %s204, 4
          %s206 = scalar_lea.vmem %s0, %s205
        $region36: #{subblock_forward.1} parent=31 // pred_fallthru
          _
      $region32: #{subblock_forward.1} parent=5 // pred_fallthru
        _
      %p207 = scmp.le.s32.totalorder 1, %s14
      %p208 = scmp.lt.s32.totalorder %s14, 3
      %p209 = pnand %p207, %p208
      %p210 = pneg %p209
      // Predicated region
      $region37: #{subblock_forward.1} parent=5 // pred_check
        _
      $region38: #{subblock_forward.1} parent=5 // pred_check_branch
        %212 = sbr.rel (%p209) target = $region40
      $region39: #{subblock_forward.1} parent=5 // pred_region
        %s213 = ssub.s32 %s14, 1
        %p214 = scmp.lt.s32.totalorder %s23, 1
        %s215 = scalar_select %p214, %s23, 1
        %p216 = scmp.lt.s32.totalorder %s24, 0
        %s217 = scalar_select %p216, %s24, 0
        %s218 = sadd.s32 %s217, %s215
        %s219 = smul.addr %s218, 4
        %s220 = scalar_lea.vmem %s0, %s219
        %p221 = pneg %p54
        %p222 = pneg %p51
        %p223 = pneg %p75
        %p224 = pneg %p72
        %p225 = pneg %p96
        %p226 = pneg %p93
        %p227 = pneg %p117
        %p228 = pneg %p114
        %p229 = pneg %p138
        %p230 = pneg %p135
        %p231 = pneg %p166
        %p232 = pneg %p163
        %s233 = sand.u32 %s153, 1
        %s234 = scalar_lea.sflag [#allocation4], %s233
        %s235 = sand.u32 %s153, 1
        %s236 = smul.addr %s235, 4
        %s237 = scalar_lea.vmem [#allocation3], %s236
        %p238 = scmp.lt.s32.totalorder %s23, 1
        %s239 = scalar_select %p238, %s23, 1
        %p240 = scmp.lt.s32.totalorder %s24, 0
        %s241 = scalar_select %p240, %s24, 0
        %s242 = sadd.s32 %s241, %s239
        %s243 = smul.addr %s242, 4
        %s244 = scalar_lea.vmem %s0, %s243
        %p245 = scmp.eq.s32.totalorder %s24, 0
        // Predicated region
        $region41: #{subblock_forward.1} parent=39 // pred_check
          %p246 = pneg %p245
        $region42: #{subblock_forward.1} parent=39 // pred_check_branch
          %248 = sbr.rel (%p246) target = $region44
        $region43: #{subblock_forward.1} parent=39 // pred_region
          %249 = vst [vmem:[#allocation2] sm:$0xf] 0.0
        $region44: #{subblock_forward.1} parent=39 // pred_fallthru
          _
        %v250 = vld [vmem:[%s244] sm:$0xf]
        %251 = vst [vmem:[#allocation2 + $0x4] sm:$0xf] %v250
        %v252 = vld [vmem:[%s1] sm:$0xff]
        %v253 = vld [vmem:[%s1 + $0x8] sm:$0xff]
        %v254 = vld [vmem:[#allocation2] sm:$0xff]
        %s255 = scalar_lea.vmem %s1, 16
        %v256 = vld [vmem:[%s255] sm:$0xff]
        %v257 = vld [vmem:[%s255 + $0x8] sm:$0xff]
        %v259 = vcombine.high %v254, %v254
        %260 = vrot.lane.b32.xlu0 %v254, 1
        %v261 = vpop.permute.xlu0 %260
        %262 = vrot.lane.b32.xlu0 %v259, 1
        %v263 = vpop.permute.xlu0 %262
        %vm264 = vcmask 7168
        %v265 = vsel %vm264, %v261, %v263
        %vm266 = vcmask 31744
        %v268 = vsel %vm266, %v256, 0
        %v271 = vsel %vm266, %v257, 0
        %vm273 = vcmask 1043456
        %v274 = vsel %vm273, %v265, 0
        %276 = vmatprep.subr.mxu0 0.0
        %277 = vmatpush1.msra.mxu0 %v274
        %278 = vmatprep.subr.mxu0 0.0
        %279 = vmatpush1.msra.mxu0 0.0
        %280 = vmatprep.subr.mxu0 0.0
        %281 = vmatpush1.msra.mxu0 0.0
        %282 = vmatprep.subr.mxu0 0.0
        %283 = vmatpush1.msra.mxu0 0.0
        %284 = vmatprep.subr.mxu0 0.0
        %285 = vmatpush1.msra.mxu0 0.0
        %286 = vmatprep.subr.mxu0 0.0
        %287 = vmatpush1.msra.mxu0 0.0
        %288 = vmatprep.subr.mxu0 0.0
        %289 = vmatpush1.msra.mxu0 0.0
        %290 = vmatprep.subr.mxu0 0.0
        %291 = vmatpush1.msra.mxu0 0.0
        %292 = vmatprep.subr.mxu0 0.0
        %293 = vmatpush1.msra.mxu0 0.0
        %294 = vmatprep.subr.mxu0 0.0
        %295 = vmatpush1.msra.mxu0 0.0
        %296 = vmatprep.subr.mxu0 0.0
        %297 = vmatpush1.msra.mxu0 0.0
        %298 = vmatprep.subr.mxu0 0.0
        %299 = vmatpush1.msra.mxu0 0.0
        %300 = vmatprep.subr.mxu0 0.0
        %301 = vmatpush1.msra.mxu0 0.0
        %302 = vmatprep.subr.mxu0 0.0
        %303 = vmatpush1.msra.mxu0 0.0
        %304 = vmatprep.subr.mxu0 0.0
        %305 = vmatpush1.msra.mxu0 0.0
        %306 = vmatprep.subr.mxu0 0.0
        %307 = vmatpush1.msra.mxu0 0.0
        %308 = vmatprep.subr.mxu0 0.0
        %309 = vmatpush1.msra.mxu0 0.0
        %310 = vmatprep.subr.mxu0 0.0
        %311 = vmatpush1.msra.mxu0 0.0
        %312 = vmatprep.subr.mxu0 0.0
        %313 = vmatpush1.msra.mxu0 0.0
        %314 = vmatprep.subr.mxu0 0.0
        %315 = vmatpush1.msra.mxu0 0.0
        %316 = vmatprep.subr.mxu0 0.0
        %317 = vmatpush1.msra.mxu0 0.0
        %318 = vmatprep.subr.mxu0 0.0
        %319 = vmatpush1.msra.mxu0 0.0
        %320 = vmatprep.subr.mxu0 0.0
        %321 = vmatpush1.msra.mxu0 0.0
        %322 = vmatprep.subr.mxu0 0.0
        %323 = vmatpush1.msra.mxu0 0.0
        %324 = vmatprep.subr.mxu0 0.0
        %325 = vmatpush1.msra.mxu0 0.0
        %326 = vmatprep.subr.mxu0 0.0
        %327 = vmatpush1.msra.mxu0 0.0
        %328 = vmatprep.subr.mxu0 0.0
        %329 = vmatpush1.msra.mxu0 0.0
        %330 = vmatprep.subr.mxu0 0.0
        %331 = vmatpush1.msra.mxu0 0.0
        %332 = vmatprep.subr.mxu0 0.0
        %333 = vmatpush1.msra.mxu0 0.0
        %334 = vmatprep.subr.mxu0 0.0
        %335 = vmatpush1.msra.mxu0 0.0
        %336 = vmatprep.subr.mxu0 0.0
        %337 = vmatpush1.msra.mxu0 0.0
        %338 = vmatprep.subr.mxu0 0.0
        %339 = vmatpush1.msra.mxu0 0.0
        %340 = vmatprep.mubr.f32.mxu0 0.0
        %341 = vmatmul.mubr.f32.gmra.mrb[0].mxu0 %v268
        %v342 = vpop.f32.mrb[0].mxu0
        %v343 = vadd.f32 0.0, %v342
        %v344 = vpop.f32.mrb[0].mxu0
        %345 = vmatprep.mubr.f32.mxu0 0.0
        %346 = vmatmul.mubr.f32.gmra.mrb[0].mxu0 %v271
        %v347 = vpop.f32.mrb[0].mxu0
        %v348 = vadd.f32 0.0, %v347
        %v349 = vpop.f32.mrb[0].mxu0
        %350 = vdwg.mxu0
        %351 = vrot.lane.b32.xlu0 %v254, 2
        %v352 = vpop.permute.xlu0 %351
        %353 = vrot.lane.b32.xlu0 %v259, 2
        %v354 = vpop.permute.xlu0 %353
        %vm355 = vcmask 15360
        %v356 = vsel %vm355, %v352, %v354
        %v358 = vsel %vm266, %v252, 0
        %v361 = vsel %vm266, %v253, 0
        %v363 = vsel %vm273, %v356, 0
        %365 = vmatprep.subr.mxu0 0.0
        %366 = vmatpush1.msra.mxu0 %v363
        %367 = vmatprep.subr.mxu0 0.0
        %368 = vmatpush1.msra.mxu0 0.0
        %369 = vmatprep.subr.mxu0 0.0
        %370 = vmatpush1.msra.mxu0 0.0
        %371 = vmatprep.subr.mxu0 0.0
        %372 = vmatpush1.msra.mxu0 0.0
        %373 = vmatprep.subr.mxu0 0.0
        %374 = vmatpush1.msra.mxu0 0.0
        %375 = vmatprep.subr.mxu0 0.0
        %376 = vmatpush1.msra.mxu0 0.0
        %377 = vmatprep.subr.mxu0 0.0
        %378 = vmatpush1.msra.mxu0 0.0
        %379 = vmatprep.subr.mxu0 0.0
        %380 = vmatpush1.msra.mxu0 0.0
        %381 = vmatprep.subr.mxu0 0.0
        %382 = vmatpush1.msra.mxu0 0.0
        %383 = vmatprep.subr.mxu0 0.0
        %384 = vmatpush1.msra.mxu0 0.0
        %385 = vmatprep.subr.mxu0 0.0
        %386 = vmatpush1.msra.mxu0 0.0
        %387 = vmatprep.subr.mxu0 0.0
        %388 = vmatpush1.msra.mxu0 0.0
        %389 = vmatprep.subr.mxu0 0.0
        %390 = vmatpush1.msra.mxu0 0.0
        %391 = vmatprep.subr.mxu0 0.0
        %392 = vmatpush1.msra.mxu0 0.0
        %393 = vmatprep.subr.mxu0 0.0
        %394 = vmatpush1.msra.mxu0 0.0
        %395 = vmatprep.subr.mxu0 0.0
        %396 = vmatpush1.msra.mxu0 0.0
        %397 = vmatprep.subr.mxu0 0.0
        %398 = vmatpush1.msra.mxu0 0.0
        %399 = vmatprep.subr.mxu0 0.0
        %400 = vmatpush1.msra.mxu0 0.0
        %401 = vmatprep.subr.mxu0 0.0
        %402 = vmatpush1.msra.mxu0 0.0
        %403 = vmatprep.subr.mxu0 0.0
        %404 = vmatpush1.msra.mxu0 0.0
        %405 = vmatprep.subr.mxu0 0.0
        %406 = vmatpush1.msra.mxu0 0.0
        %407 = vmatprep.subr.mxu0 0.0
        %408 = vmatpush1.msra.mxu0 0.0
        %409 = vmatprep.subr.mxu0 0.0
        %410 = vmatpush1.msra.mxu0 0.0
        %411 = vmatprep.subr.mxu0 0.0
        %412 = vmatpush1.msra.mxu0 0.0
        %413 = vmatprep.subr.mxu0 0.0
        %414 = vmatpush1.msra.mxu0 0.0
        %415 = vmatprep.subr.mxu0 0.0
        %416 = vmatpush1.msra.mxu0 0.0
        %417 = vmatprep.subr.mxu0 0.0
        %418 = vmatpush1.msra.mxu0 0.0
        %419 = vmatprep.subr.mxu0 0.0
        %420 = vmatpush1.msra.mxu0 0.0
        %421 = vmatprep.subr.mxu0 0.0
        %422 = vmatpush1.msra.mxu0 0.0
        %423 = vmatprep.subr.mxu0 0.0
        %424 = vmatpush1.msra.mxu0 0.0
        %425 = vmatprep.subr.mxu0 0.0
        %426 = vmatpush1.msra.mxu0 0.0
        %427 = vmatprep.subr.mxu0 0.0
        %428 = vmatpush1.msra.mxu0 0.0
        %429 = vmatprep.mubr.f32.mxu0 0.0
        %430 = vmatmul.mubr.f32.gmra.mrb[0].mxu0 %v358
        %v431 = vpop.f32.mrb[0].mxu0
        %v432 = vadd.f32 %v343, %v431
        %v433 = vpop.f32.mrb[0].mxu0
        %434 = vmatprep.mubr.f32.mxu0 0.0
        %435 = vmatmul.mubr.f32.gmra.mrb[0].mxu0 %v361
        %v436 = vpop.f32.mrb[0].mxu0
        %v437 = vadd.f32 %v348, %v436
        %v438 = vpop.f32.mrb[0].mxu0
        %439 = vdwg.mxu0
        %s440 = scalar_lea.vmem %s1, 32
        %v441 = vld [vmem:[%s440] sm:$0xff]
        %v442 = vld [vmem:[%s440 + $0x8] sm:$0xff]
        %v443 = vld [vmem:[#allocation2 + $0x4] sm:$0xf]
        %v445 = vsel %vm266, %v441, 0
        %v448 = vsel %vm266, %v442, 0
        %v451 = vsel %vm273, %v443, 0
        %453 = vmatprep.subr.mxu0 0.0
        %454 = vmatpush1.msra.mxu0 %v451
        %455 = vmatprep.subr.mxu0 0.0
        %456 = vmatpush1.msra.mxu0 0.0
        %457 = vmatprep.subr.mxu0 0.0
        %458 = vmatpush1.msra.mxu0 0.0
        %459 = vmatprep.subr.mxu0 0.0
        %460 = vmatpush1.msra.mxu0 0.0
        %461 = vmatprep.subr.mxu0 0.0
        %462 = vmatpush1.msra.mxu0 0.0
        %463 = vmatprep.subr.mxu0 0.0
        %464 = vmatpush1.msra.mxu0 0.0
        %465 = vmatprep.subr.mxu0 0.0
        %466 = vmatpush1.msra.mxu0 0.0
        %467 = vmatprep.subr.mxu0 0.0
        %468 = vmatpush1.msra.mxu0 0.0
        %469 = vmatprep.subr.mxu0 0.0
        %470 = vmatpush1.msra.mxu0 0.0
        %471 = vmatprep.subr.mxu0 0.0
        %472 = vmatpush1.msra.mxu0 0.0
        %473 = vmatprep.subr.mxu0 0.0
        %474 = vmatpush1.msra.mxu0 0.0
        %475 = vmatprep.subr.mxu0 0.0
        %476 = vmatpush1.msra.mxu0 0.0
        %477 = vmatprep.subr.mxu0 0.0
        %478 = vmatpush1.msra.mxu0 0.0
        %479 = vmatprep.subr.mxu0 0.0
        %480 = vmatpush1.msra.mxu0 0.0
        %481 = vmatprep.subr.mxu0 0.0
        %482 = vmatpush1.msra.mxu0 0.0
        %483 = vmatprep.subr.mxu0 0.0
        %484 = vmatpush1.msra.mxu0 0.0
        %485 = vmatprep.subr.mxu0 0.0
        %486 = vmatpush1.msra.mxu0 0.0
        %487 = vmatprep.subr.mxu0 0.0
        %488 = vmatpush1.msra.mxu0 0.0
        %489 = vmatprep.subr.mxu0 0.0
        %490 = vmatpush1.msra.mxu0 0.0
        %491 = vmatprep.subr.mxu0 0.0
        %492 = vmatpush1.msra.mxu0 0.0
        %493 = vmatprep.subr.mxu0 0.0
        %494 = vmatpush1.msra.mxu0 0.0
        %495 = vmatprep.subr.mxu0 0.0
        %496 = vmatpush1.msra.mxu0 0.0
        %497 = vmatprep.subr.mxu0 0.0
        %498 = vmatpush1.msra.mxu0 0.0
        %499 = vmatprep.subr.mxu0 0.0
        %500 = vmatpush1.msra.mxu0 0.0
        %501 = vmatprep.subr.mxu0 0.0
        %502 = vmatpush1.msra.mxu0 0.0
        %503 = vmatprep.subr.mxu0 0.0
        %504 = vmatpush1.msra.mxu0 0.0
        %505 = vmatprep.subr.mxu0 0.0
        %506 = vmatpush1.msra.mxu0 0.0
        %507 = vmatprep.subr.mxu0 0.0
        %508 = vmatpush1.msra.mxu0 0.0
        %509 = vmatprep.subr.mxu0 0.0
        %510 = vmatpush1.msra.mxu0 0.0
        %511 = vmatprep.subr.mxu0 0.0
        %512 = vmatpush1.msra.mxu0 0.0
        %513 = vmatprep.subr.mxu0 0.0
        %514 = vmatpush1.msra.mxu0 0.0
        %515 = vmatprep.subr.mxu0 0.0
        %516 = vmatpush1.msra.mxu0 0.0
        %517 = vmatprep.mubr.f32.mxu0 0.0
        %518 = vmatmul.mubr.f32.gmra.mrb[0].mxu0 %v445
        %v519 = vpop.f32.mrb[0].mxu0
        %v520 = vadd.f32 0.0, %v519
        %v521 = vpop.f32.mrb[0].mxu0
        %522 = vmatprep.mubr.f32.mxu0 0.0
        %523 = vmatmul.mubr.f32.gmra.mrb[0].mxu0 %v448
        %v524 = vpop.f32.mrb[0].mxu0
        %v525 = vadd.f32 0.0, %v524
        %v526 = vpop.f32.mrb[0].mxu0
        %527 = vdwg.mxu0
        %v528 = vadd.f32 %v432, %v520
        %v529 = vadd.f32 %v437, %v525
        %v530 = vld [vmem:[%s2] sm:$0xff]
        %v531 = vld [vmem:[%s2 + $0x8] sm:$0xff]
        %533 = vset.pattern.permute.xlu0 0
        %534 = vperm.xlu0 %533, %v530
        %v535 = vpop.permute.xlu0 %534
        %538 = vset.pattern.permute.xlu0 0
        %539 = vperm.xlu0 %538, %v531
        %v540 = vpop.permute.xlu0 %539
        %v542 = vadd.f32 %v528, %v535
        %v543 = vadd.f32 %v529, %v540
        %v544 = vmax.f32 %v542, 0.0
        %v545 = vxor.u32 %v543, 2147483648
        %v546 = vmul.f32 %v545, 1.442695
        %v547 = vpow.pop %v546
        %v548 = vadd.f32 %v547, 1.0
        %v549 = vrcp.pop %v548
        %v550 = vmul.f32 1.0, %v549
        %v551 = vmul.f32 %v544, %v550
        %v552 = vld [vmem:[%s3] sm:$0xf]
        %v553 = vld [vmem:[%s4] sm:$0xf]
        %555 = vset.pattern.permute.xlu0 0
        %556 = vperm.xlu0 %555, %v553
        %v557 = vpop.permute.xlu0 %556
        %vm559 = vcmask 64512
        %v561 = vsel %vm559, %v552, 0
        %563 = vmatprep.subr.mxu0 0.0
        %564 = vmatpush1.msra.mxu0 %v551
        %565 = vmatprep.subr.mxu0 0.0
        %566 = vmatpush1.msra.mxu0 0.0
        %567 = vmatprep.subr.mxu0 0.0
        %568 = vmatpush1.msra.mxu0 0.0
        %569 = vmatprep.subr.mxu0 0.0
        %570 = vmatpush1.msra.mxu0 0.0
        %571 = vmatprep.subr.mxu0 0.0
        %572 = vmatpush1.msra.mxu0 0.0
        %573 = vmatprep.subr.mxu0 0.0
        %574 = vmatpush1.msra.mxu0 0.0
        %575 = vmatprep.subr.mxu0 0.0
        %576 = vmatpush1.msra.mxu0 0.0
        %577 = vmatprep.subr.mxu0 0.0
        %578 = vmatpush1.msra.mxu0 0.0
        %579 = vmatprep.subr.mxu0 0.0
        %580 = vmatpush1.msra.mxu0 0.0
        %581 = vmatprep.subr.mxu0 0.0
        %582 = vmatpush1.msra.mxu0 0.0
        %583 = vmatprep.subr.mxu0 0.0
        %584 = vmatpush1.msra.mxu0 0.0
        %585 = vmatprep.subr.mxu0 0.0
        %586 = vmatpush1.msra.mxu0 0.0
        %587 = vmatprep.subr.mxu0 0.0
        %588 = vmatpush1.msra.mxu0 0.0
        %589 = vmatprep.subr.mxu0 0.0
        %590 = vmatpush1.msra.mxu0 0.0
        %591 = vmatprep.subr.mxu0 0.0
        %592 = vmatpush1.msra.mxu0 0.0
        %593 = vmatprep.subr.mxu0 0.0
        %594 = vmatpush1.msra.mxu0 0.0
        %595 = vmatprep.subr.mxu0 0.0
        %596 = vmatpush1.msra.mxu0 0.0
        %597 = vmatprep.subr.mxu0 0.0
        %598 = vmatpush1.msra.mxu0 0.0
        %599 = vmatprep.subr.mxu0 0.0
        %600 = vmatpush1.msra.mxu0 0.0
        %601 = vmatprep.subr.mxu0 0.0
        %602 = vmatpush1.msra.mxu0 0.0
        %603 = vmatprep.subr.mxu0 0.0
        %604 = vmatpush1.msra.mxu0 0.0
        %605 = vmatprep.subr.mxu0 0.0
        %606 = vmatpush1.msra.mxu0 0.0
        %607 = vmatprep.subr.mxu0 0.0
        %608 = vmatpush1.msra.mxu0 0.0
        %609 = vmatprep.subr.mxu0 0.0
        %610 = vmatpush1.msra.mxu0 0.0
        %611 = vmatprep.subr.mxu0 0.0
        %612 = vmatpush1.msra.mxu0 0.0
        %613 = vmatprep.subr.mxu0 0.0
        %614 = vmatpush1.msra.mxu0 0.0
        %615 = vmatprep.subr.mxu0 0.0
        %616 = vmatpush1.msra.mxu0 0.0
        %617 = vmatprep.subr.mxu0 0.0
        %618 = vmatpush1.msra.mxu0 0.0
        %619 = vmatprep.subr.mxu0 0.0
        %620 = vmatpush1.msra.mxu0 0.0
        %621 = vmatprep.subr.mxu0 0.0
        %622 = vmatpush1.msra.mxu0 0.0
        %623 = vmatprep.subr.mxu0 0.0
        %624 = vmatpush1.msra.mxu0 0.0
        %625 = vmatprep.subr.mxu0 0.0
        %626 = vmatpush1.msra.mxu0 0.0
        %627 = vmatprep.mubr.f32.mxu0 0.0
        %628 = vmatmul.mubr.f32.gmra.mrb[0].mxu0 %v561
        %v629 = vpop.f32.mrb[0].mxu0
        %v630 = vadd.f32 %v557, %v629
        %v631 = vpop.f32.mrb[0].mxu0
        %632 = vdwg.mxu0
        %v633 = vadd.f32 %v630, %v250
        %634 = vst [vmem:[%s237] sm:$0xf] %v633
        %v635 = vld [vmem:[#allocation2 + $0x4] sm:$0xf]
        %636 = vst [vmem:[#allocation2] sm:$0xf] %v635
        %s637 = sand.u32 %s153, 1
        %s638 = scalar_lea.sflag [#allocation4], %s637
        %s639 = sand.u32 %s153, 1
        %s640 = smul.addr %s639, 4
        %s641 = scalar_lea.vmem [#allocation3], %s640
        // Predicated region
        $region45: #{subblock_forward.1} parent=39 // pred_check
          %p642 = pneg %p163
        $region46: #{subblock_forward.1} parent=39 // pred_check_branch
          %644 = sbr.rel (%p642) target = $region48
        $region47: #{subblock_forward.1} parent=39 // pred_region
          %s646 = ssub.s32 64, 64
          %647 = vsyncadd %s638, %s646
          %s648 = sadd.s32 %s24, %s23
          %s649 = smul.addr %s648, 64
          %s650 = scalar_lea.hbm %s5, %s649
          %s652 = sshll.u32 %s641, 4
          %s653 = int_to_ptr.vmem [resolvable:$true] %s652
          %655 = dma.vmem_to_hbm [thread:$0]  %s653, 64, %s650, %s638
        $region48: #{subblock_forward.1} parent=39 // pred_fallthru
          _
      $region40: #{subblock_forward.1} parent=5 // pred_fallthru
        _
      %p656 = scmp.le.s32.totalorder 2, %s14
      // Predicated region
      $region49: #{subblock_forward.1} parent=5 // pred_check
        %p657 = pneg %p656
      $region50: #{subblock_forward.1} parent=5 // pred_check_branch
        %659 = sbr.rel (%p657) target = $region52
      $region51: #{subblock_forward.1} parent=5 // pred_region
        %s660 = ssub.s32 %s14, 2
        // Predicated region
        $region53: #{subblock_forward.1} parent=51 // pred_check
          %p661 = pneg %p169
        $region54: #{subblock_forward.1} parent=51 // pred_check_branch
          %663 = sbr.rel (%p661) target = $region56
        $region55: #{subblock_forward.1} parent=51 // pred_region
          %s664 = sand.u32 %s154, 1
          %s665 = scalar_lea.sflag [#allocation4], %s664
          %s666 = sand.u32 %s154, 1
          %s667 = smul.addr %s666, 4
          %s668 = scalar_lea.vmem [#allocation3], %s667
          %669 = dma.done %s665, 64
        $region56: #{subblock_forward.1} parent=51 // pred_fallthru
          _
      $region52: #{subblock_forward.1} parent=5 // pred_fallthru
        _
    $region6: #{subblock_forward.1} parent=1 // loop_footer
      %s18 = sadd.s32 1, %s14
    $region7: #{subblock_forward.1} parent=1 // loop_footer_branch
      %13 = sbr.rel target = $region3
    $region8: #{subblock_forward.1} parent=1 // loop_exit
      _
    %670 = vsyncpa [#allocation4], 1
    %s671 = scalar_lea.sflag [#allocation4], 1
    %672 = vsyncpa %s671, 1

</llo_original>
